<compile_context>
chip_gen: v7x
topology: tpu7x:2x2x1
jax: 0.10.0
libtpu: 0.0.40
codegen_flags: <defaults>
</compile_context>

<pallas_src>
import functools

import jax
import jax.numpy as jnp
from jax.experimental import pallas as pl
from jax.experimental.pallas import tpu as pltpu


def _vmem_limit_bytes(frac=0.75, fallback=64 * 1024 * 1024):
    """Per-generation VMEM budget (~48 MiB on v7x, ~96 MiB on v5e/v6e)."""
    try:
        cap = pltpu.get_tpu_info().vmem_capacity_bytes
    except Exception:
        cap = fallback
    return int(cap * frac)


def _conv_stats_kernel(x_ref, w_ref, conv_ref, stats_ref, *, W):
    """Phase 1: 3x3 conv (pad=1, stride=1, no bias) + merged BN partials.

    x_ref:     (1, Cin, H*W)   f32 input image, flattened spatial (lane-dense)
    w_ref:     (Cout, 9*Cin)   bf16 weights, K ordered (ky, kx, ci)
    conv_ref:  (1, Cout, H*W)  bf16 conv output (lane-dense stores)
    stats_ref: (1, Cout, 2)    f32 per-image per-channel [sum, sum_of_squares]
    """
    _, Cin, HW = x_ref.shape
    bf16 = jnp.bfloat16

    x = x_ref[0].astype(bf16)                              # (Cin, HW)

    # Column index of each flat pixel, for masking the left/right halo columns.
    col_pos = jax.lax.broadcasted_iota(jnp.int32, (1, HW), 1) % W
    left_edge = col_pos == 0
    right_edge = col_pos == (W - 1)

    def shifted(o):
        # value at pixel p becomes x[:, p + o]; zero-filled outside [0, HW).
        if o == 0:
            return x
        z = jnp.zeros((Cin, abs(o)), bf16)
        if o > 0:
            return jnp.concatenate([x[:, o:], z], axis=1)
        return jnp.concatenate([z, x[:, :HW + o]], axis=1)

    # im2col^T built in registers: tap (ky, kx) occupies rows [k*Cin, (k+1)*Cin)
    # with k = 3*ky + kx.  Row/column halos come from the zero-fill of the lane
    # shift plus the left/right edge masks (no padded copy anywhere).
    # TODO(synk): for Cin >= ~32 switch to 9 accumulating K=Cin matmuls instead
    # of materializing the (9*Cin, H*W) concat.
    taps = []
    for ky in range(3):
        for kx in range(3):
            t = shifted((ky - 1) * W + (kx - 1))
            if kx == 0:
                t = jnp.where(left_edge, jnp.zeros_like(t), t)
            elif kx == 2:
                t = jnp.where(right_edge, jnp.zeros_like(t), t)
            taps.append(t)
    col_t = jnp.concatenate(taps, axis=0)                  # (9*Cin, HW) bf16

    acc = jnp.dot(w_ref[...], col_t,
                  preferred_element_type=jnp.float32)      # (Cout, HW) f32

    conv_ref[0] = acc.astype(conv_ref.dtype)               # lane-dense bf16 store

    # Merged BN partials from the f32 accumulator (single tiny output DMA).
    # NOTE: global variance is later formed as E[x^2] - E[x]^2 in f32.
    stats_ref[0] = jnp.concatenate(
        [jnp.sum(acc, axis=1, keepdims=True),
         jnp.sum(acc * acc, axis=1, keepdims=True)], axis=1)   # (Cout, 2)


def _bn_act_kernel(conv_ref, scale_ref, shift_ref, o_ref):
    """Phase 2: y = conv * scale + shift (per channel), then LeakyReLU(0.2)."""
    y = conv_ref[...].astype(jnp.float32) * scale_ref[...] + shift_ref[...]
    o_ref[...] = jnp.maximum(y, 0.2 * y).astype(o_ref.dtype)


def _pick_hw_block(hw, cout, bytes_per_elem, target_bytes):
    """Largest lane-dense (multiple-of-128 or full-extent) divisor of hw whose
    block stays under ~target_bytes."""
    if hw % 128 != 0 or cout * hw * bytes_per_elem <= target_bytes:
        return hw
    best = 128
    blk = 128
    while blk <= hw:
        if hw % blk == 0 and cout * blk * bytes_per_elem <= target_bytes:
            best = blk
        blk += 128
    return best


def vgg_layer_forward(x_nchw, w_oihw, gamma, beta, *, eps=1e-5):
    """Conv2d(3x3, pad=1, no bias) + BatchNorm2d(train) + LeakyReLU(0.2).

    Public layout is NCHW (PyTorch convention); the kernels run on the free
    NC(HW) reshape so no transpose HBM passes are needed on either side.
    """
    N, Cin, H, W = x_nchw.shape
    Cout = w_oihw.shape[0]
    HW = H * W
    out_dtype = x_nchw.dtype
    vmem_limit = _vmem_limit_bytes()

    # Free reshape of NCHW -> NC(HW); kept f32, cast to bf16 inside the kernel
    # (saves a separate convert pass through HBM).
    x_flat = x_nchw.reshape(N, Cin, HW)
    # OIHW -> (co, ky, kx, ci) -> (Cout, 9*Cin), matching the kernel tap order.
    w_mat = (jnp.transpose(w_oihw, (0, 2, 3, 1))
             .reshape(Cout, 9 * Cin).astype(jnp.bfloat16))

    # ---- phase 1: conv + per-image BN partials, grid over N ("parallel") ----
    # TODO(synk): at real VGG sizes (large H*W*Cin, esp. v7x's 64 MiB VMEM)
    # also tile phase 1 over row blocks with a 1-row halo via pl.ANY + manual
    # make_async_copy.
    conv_bf16, stats = pl.pallas_call(
        functools.partial(_conv_stats_kernel, W=W),
        out_shape=(
            jax.ShapeDtypeStruct((N, Cout, HW), jnp.bfloat16),
            jax.ShapeDtypeStruct((N, Cout, 2), jnp.float32),
        ),
        grid=(N,),
        in_specs=[
            pl.BlockSpec((1, Cin, HW), lambda n: (n, 0, 0)),
            pl.BlockSpec((Cout, 9 * Cin), lambda n: (0, 0)),
        ],
        out_specs=(
            pl.BlockSpec((1, Cout, HW), lambda n: (n, 0, 0)),
            pl.BlockSpec((1, Cout, 2), lambda n: (n, 0, 0)),
        ),
        compiler_params=pltpu.CompilerParams(
            dimension_semantics=("parallel",),
            vmem_limit_bytes=vmem_limit,
        ),
    )(x_flat, w_mat)

    # ---- tiny O(N*Cout) reduction + BN fold into per-channel scale/shift ----
    count = jnp.float32(N * HW)
    mean = jnp.sum(stats[:, :, 0], axis=0) / count                  # (Cout,)
    ex2 = jnp.sum(stats[:, :, 1], axis=0) / count
    var = jnp.maximum(ex2 - mean * mean, 0.0)                       # biased (train)
    inv_std = jax.lax.rsqrt(var + jnp.float32(eps))
    g = gamma.astype(jnp.float32)
    b = beta.astype(jnp.float32)
    scale = (g * inv_std).reshape(1, Cout, 1)
    shift = (b - mean * g * inv_std).reshape(1, Cout, 1)

    # ---- phase 2: normalize + affine + LeakyReLU, lane-dense over H*W ----
    hw_blk = _pick_hw_block(HW, Cout, bytes_per_elem=6, target_bytes=4 << 20)
    out_flat = pl.pallas_call(
        _bn_act_kernel,
        out_shape=jax.ShapeDtypeStruct((N, Cout, HW), out_dtype),
        grid=(N, HW // hw_blk),
        in_specs=[
            pl.BlockSpec((1, Cout, hw_blk), lambda n, p: (n, 0, p)),
            pl.BlockSpec((1, Cout, 1), lambda n, p: (0, 0, 0)),
            pl.BlockSpec((1, Cout, 1), lambda n, p: (0, 0, 0)),
        ],
        out_specs=pl.BlockSpec((1, Cout, hw_blk), lambda n, p: (n, 0, p)),
        compiler_params=pltpu.CompilerParams(
            dimension_semantics=("parallel", "parallel"),
            vmem_limit_bytes=vmem_limit,
        ),
    )(conv_bf16, scale, shift)

    return out_flat.reshape(N, Cout, H, W)      # free reshape, already NCHW


def _reference(x, w, gamma, beta, eps=1e-5):
    """Pure-JAX reference: Conv2d(3,1,1,bias=False) + BN(train) + LeakyReLU."""
    conv = jax.lax.conv_general_dilated(
        x, w, window_strides=(1, 1), padding=((1, 1), (1, 1)),
        dimension_numbers=("NCHW", "OIHW", "NCHW"))
    mean = jnp.mean(conv, axis=(0, 2, 3), keepdims=True)
    var = jnp.mean((conv - mean) ** 2, axis=(0, 2, 3), keepdims=True)
    y = (conv - mean) * jax.lax.rsqrt(var + eps)
    y = y * gamma.reshape(1, -1, 1, 1) + beta.reshape(1, -1, 1, 1)
    return jnp.maximum(y, 0.2 * y)


if __name__ == "__main__":
    # Small shapes consistent with vgg_layer(nin=4, nout=8) on 16x16 images.
    N, Cin, Cout, H, W = 2, 4, 8, 16, 16

    key = jax.random.PRNGKey(0)
    kx, kw, kg, kb = jax.random.split(key, 4)

    x = jax.random.normal(kx, (N, Cin, H, W), dtype=jnp.float32)
    # Conv2d weight (nout, nin, 3, 3), Kaiming-uniform-ish deterministic init.
    fan_in = Cin * 3 * 3
    bound = (1.0 / fan_in) ** 0.5
    w = jax.random.uniform(kw, (Cout, Cin, 3, 3), jnp.float32, -bound, bound)
    # BatchNorm affine params (non-trivial but deterministic).
    gamma = 1.0 + 0.1 * jax.random.normal(kg, (Cout,), dtype=jnp.float32)
    beta = 0.1 * jax.random.normal(kb, (Cout,), dtype=jnp.float32)

    out = jax.jit(vgg_layer_forward)(x, w, gamma, beta)
    jax.block_until_ready(out)

    assert out.shape == (N, Cout, H, W), out.shape
    assert bool(jnp.all(jnp.isfinite(out))), "non-finite output"

    ref = _reference(x, w, gamma, beta)
    max_err = float(jnp.max(jnp.abs(out - ref)))
    assert max_err < 1e-1, f"mismatch vs reference: max_err={max_err}"

    print("KERNEL_OK")
</pallas_src>

<mosaic_0001>
module attributes {stable_mosaic.version = 11 : i64} {
  func.func @_bn_act_kernel(%arg0: i32, %arg1: i32, %arg2: memref<1x8x256xbf16, #tpu.memory_space<vmem>>, %arg3: memref<1x8x1xf32, #tpu.memory_space<vmem>>, %arg4: memref<1x8x1xf32, #tpu.memory_space<vmem>>, %arg5: memref<1x8x256xf32, #tpu.memory_space<vmem>>) attributes {dimension_semantics = [#tpu.dimension_semantics<parallel>, #tpu.dimension_semantics<parallel>], iteration_bounds = array<i64: 2, 1>, scalar_prefetch = 0 : i64, scratch_operands = 0 : i64, tpu.core_type = #tpu.core_type<tc>, window_params = [{transform_indices = @transform_0, window_bounds = array<i64: 1, 8, 256>}, {pipeline_mode = #tpu.pipeline_mode<synchronous>, transform_indices = @transform_1, window_bounds = array<i64: 1, 8, 1>}, {pipeline_mode = #tpu.pipeline_mode<synchronous>, transform_indices = @transform_2, window_bounds = array<i64: 1, 8, 1>}, {transform_indices = @transform_3, window_bounds = array<i64: 1, 8, 256>}]} {
    %c0 = arith.constant 0 : index
    %c0_0 = arith.constant 0 : index
    %c0_1 = arith.constant 0 : index
    %0 = vector.load %arg2[%c0, %c0_0, %c0_1] : memref<1x8x256xbf16, #tpu.memory_space<vmem>>, vector<1x8x256xbf16>
    %1 = arith.extf %0 : vector<1x8x256xbf16> to vector<1x8x256xf32>
    %c0_2 = arith.constant 0 : index
    %c0_3 = arith.constant 0 : index
    %c0_4 = arith.constant 0 : index
    %2 = vector.load %arg3[%c0_2, %c0_3, %c0_4] : memref<1x8x1xf32, #tpu.memory_space<vmem>>, vector<1x8x1xf32>
    %3 = vector.broadcast %2 : vector<1x8x1xf32> to vector<1x8x256xf32>
    %4 = arith.mulf %1, %3 : vector<1x8x256xf32>
    %c0_5 = arith.constant 0 : index
    %c0_6 = arith.constant 0 : index
    %c0_7 = arith.constant 0 : index
    %5 = vector.load %arg4[%c0_5, %c0_6, %c0_7] : memref<1x8x1xf32, #tpu.memory_space<vmem>>, vector<1x8x1xf32>
    %6 = vector.broadcast %5 : vector<1x8x1xf32> to vector<1x8x256xf32>
    %7 = arith.addf %4, %6 : vector<1x8x256xf32>
    %cst = arith.constant 2.000000e-01 : f32
    %8 = vector.broadcast %cst : f32 to vector<1x8x256xf32>
    %9 = arith.mulf %8, %7 : vector<1x8x256xf32>
    %10 = arith.maximumf %7, %9 : vector<1x8x256xf32>
    %c0_8 = arith.constant 0 : index
    %c0_9 = arith.constant 0 : index
    %c0_10 = arith.constant 0 : index
    %11 = vector.load %arg5[%c0_8, %c0_9, %c0_10] : memref<1x8x256xf32, #tpu.memory_space<vmem>>, vector<1x8x256xf32>
    tpu.vector_store %arg5[%c0_8, %c0_9, %c0_10], %10 {strides = array<i32>} : memref<1x8x256xf32, #tpu.memory_space<vmem>>, vector<1x8x256xf32>,
    return
  }
  func.func @transform_0(%arg0: i32, %arg1: i32) -> (i32, i32, i32) {
    %c0_i32 = arith.constant 0 : i32
    %c0_i32_0 = arith.constant 0 : i32
    return %arg0, %c0_i32, %arg1 : i32, i32, i32
  }
  func.func @transform_1(%arg0: i32, %arg1: i32) -> (i32, i32, i32) {
    %c0_i32 = arith.constant 0 : i32
    %c0_i32_0 = arith.constant 0 : i32
    %c0_i32_1 = arith.constant 0 : i32
    %c0_i32_2 = arith.constant 0 : i32
    return %c0_i32, %c0_i32_0, %c0_i32_1 : i32, i32, i32
  }
  func.func @transform_2(%arg0: i32, %arg1: i32) -> (i32, i32, i32) {
    %c0_i32 = arith.constant 0 : i32
    %c0_i32_0 = arith.constant 0 : i32
    %c0_i32_1 = arith.constant 0 : i32
    %c0_i32_2 = arith.constant 0 : i32
    return %c0_i32, %c0_i32_0, %c0_i32_1 : i32, i32, i32
  }
  func.func @transform_3(%arg0: i32, %arg1: i32) -> (i32, i32, i32) {
    %c0_i32 = arith.constant 0 : i32
    %c0_i32_0 = arith.constant 0 : i32
    return %arg0, %c0_i32, %arg1 : i32, i32, i32
  }
}

module attributes {stable_mosaic.version = 11 : i64} {
  func.func @_conv_stats_kernel(%arg0: i32, %arg1: memref<1x4x256xf32, #tpu.memory_space<vmem>>, %arg2: memref<8x36xbf16, #tpu.memory_space<vmem>>, %arg3: memref<1x8x256xbf16, #tpu.memory_space<vmem>>, %arg4: memref<1x8x2xf32, #tpu.memory_space<vmem>>) attributes {dimension_semantics = [#tpu.dimension_semantics<parallel>], iteration_bounds = array<i64: 2>, scalar_prefetch = 0 : i64, scratch_operands = 0 : i64, tpu.core_type = #tpu.core_type<tc>, window_params = [{transform_indices = @transform_0, window_bounds = array<i64: 1, 4, 256>}, {pipeline_mode = #tpu.pipeline_mode<synchronous>, transform_indices = @transform_1, window_bounds = array<i64: 8, 36>}, {transform_indices = @transform_2, window_bounds = array<i64: 1, 8, 256>}, {transform_indices = @transform_3, window_bounds = array<i64: 1, 8, 2>}]} {
    %c0 = arith.constant 0 : index
    %c0_0 = arith.constant 0 : index
    %c0_1 = arith.constant 0 : index
    %0 = vector.load %arg1[%c0, %c0_0, %c0_1] : memref<1x4x256xf32, #tpu.memory_space<vmem>>, vector<1x4x256xf32>
    %1 = vector.shape_cast %0 : vector<1x4x256xf32> to vector<4x256xf32>
    %2 = arith.truncf %1 : vector<4x256xf32> to vector<4x256xbf16>
    %3 = tpu.iota {dimensions = array<i32: 1>} : vector<1x256xi32>
    %c16_i32 = arith.constant 16 : i32
    %c0_i32 = arith.constant 0 : i32
    %4 = arith.cmpi eq, %c16_i32, %c0_i32 : i32
    %c1_i32 = arith.constant 1 : i32
    %5 = arith.select %4, %c1_i32, %c16_i32 : i32
    %6 = vector.broadcast %5 : i32 to vector<1x256xi32>
    %7 = arith.remsi %3, %6 : vector<1x256xi32>
    %c0_i32_2 = arith.constant 0 : i32
    %8 = vector.broadcast %c0_i32_2 : i32 to vector<1x256xi32>
    %9 = arith.cmpi ne, %7, %8 : vector<1x256xi32>
    %c0_i32_3 = arith.constant 0 : i32
    %10 = vector.broadcast %c0_i32_3 : i32 to vector<1x256xi32>
    %11 = arith.cmpi slt, %7, %10 : vector<1x256xi32>
    %c0_i32_4 = arith.constant 0 : i32
    %12 = arith.cmpi slt, %5, %c0_i32_4 : i32
    %13 = vector.broadcast %12 : i1 to vector<1x256xi1>
    %14 = vector.broadcast %13 : vector<1x256xi1> to vector<1x256xi1>
    %15 = arith.xori %11, %14 : vector<1x256xi1>
    %16 = arith.andi %15, %9 : vector<1x256xi1>
    %17 = vector.broadcast %5 : i32 to vector<1x256xi32>
    %18 = arith.addi %7, %17 : vector<1x256xi32>
    %19 = arith.select %16, %18, %7 : vector<1x256xi1>, vector<1x256xi32>
    %c0_i32_5 = arith.constant 0 : i32
    %20 = vector.broadcast %c0_i32_5 : i32 to vector<1x256xi32>
    %21 = arith.cmpi eq, %19, %20 : vector<1x256xi32>
    %c15_i32 = arith.constant 15 : i32
    %22 = vector.broadcast %c15_i32 : i32 to vector<1x256xi32>
    %23 = arith.cmpi eq, %19, %22 : vector<1x256xi32>
    %cst = arith.constant 0.000000e+00 : bf16
    %24 = vector.broadcast %cst : bf16 to vector<4x17xbf16>
    %25 = vector.extract_strided_slice %2 {offsets = [0, 0], sizes = [4, 239], strides = [1, 1]} : vector<4x256xbf16> to vector<4x239xbf16>
    %26 = tpu.concatenate %24, %25 in 1 : vector<4x17xbf16>, vector<4x239xbf16> -> vector<4x256xbf16>
    %cst_6 = arith.constant 0.000000e+00 : bf16
    %27 = vector.broadcast %cst_6 : bf16 to vector<4x256xbf16>
    %28 = vector.shape_cast %21 : vector<1x256xi1> to vector<1x256xi1>
    %29 = vector.broadcast %28 : vector<1x256xi1> to vector<4x256xi1>
    %30 = arith.select %29, %27, %26 : vector<4x256xi1>, vector<4x256xbf16>
    %cst_7 = arith.constant 0.000000e+00 : bf16
    %31 = vector.broadcast %cst_7 : bf16 to vector<4x16xbf16>
    %32 = vector.extract_strided_slice %2 {offsets = [0, 0], sizes = [4, 240], strides = [1, 1]} : vector<4x256xbf16> to vector<4x240xbf16>
    %33 = tpu.concatenate %31, %32 in 1 : vector<4x16xbf16>, vector<4x240xbf16> -> vector<4x256xbf16>
    %cst_8 = arith.constant 0.000000e+00 : bf16
    %34 = vector.broadcast %cst_8 : bf16 to vector<4x15xbf16>
    %35 = vector.extract_strided_slice %2 {offsets = [0, 0], sizes = [4, 241], strides = [1, 1]} : vector<4x256xbf16> to vector<4x241xbf16>
    %36 = tpu.concatenate %34, %35 in 1 : vector<4x15xbf16>, vector<4x241xbf16> -> vector<4x256xbf16>
    %cst_9 = arith.constant 0.000000e+00 : bf16
    %37 = vector.broadcast %cst_9 : bf16 to vector<4x256xbf16>
    %38 = vector.shape_cast %23 : vector<1x256xi1> to vector<1x256xi1>
    %39 = vector.broadcast %38 : vector<1x256xi1> to vector<4x256xi1>
    %40 = arith.select %39, %37, %36 : vector<4x256xi1>, vector<4x256xbf16>
    %cst_10 = arith.constant 0.000000e+00 : bf16
    %41 = vector.broadcast %cst_10 : bf16 to vector<4x1xbf16>
    %42 = vector.extract_strided_slice %2 {offsets = [0, 0], sizes = [4, 255], strides = [1, 1]} : vector<4x256xbf16> to vector<4x255xbf16>
    %43 = tpu.concatenate %41, %42 in 1 : vector<4x1xbf16>, vector<4x255xbf16> -> vector<4x256xbf16>
    %cst_11 = arith.constant 0.000000e+00 : bf16
    %44 = vector.broadcast %cst_11 : bf16 to vector<4x256xbf16>
    %45 = vector.shape_cast %21 : vector<1x256xi1> to vector<1x256xi1>
    %46 = vector.broadcast %45 : vector<1x256xi1> to vector<4x256xi1>
    %47 = arith.select %46, %44, %43 : vector<4x256xi1>, vector<4x256xbf16>
    %cst_12 = arith.constant 0.000000e+00 : bf16
    %48 = vector.broadcast %cst_12 : bf16 to vector<4x1xbf16>
    %49 = vector.extract_strided_slice %2 {offsets = [0, 1], sizes = [4, 255], strides = [1, 1]} : vector<4x256xbf16> to vector<4x255xbf16>
    %50 = tpu.concatenate %49, %48 in 1 : vector<4x255xbf16>, vector<4x1xbf16> -> vector<4x256xbf16>
    %cst_13 = arith.constant 0.000000e+00 : bf16
    %51 = vector.broadcast %cst_13 : bf16 to vector<4x256xbf16>
    %52 = vector.shape_cast %23 : vector<1x256xi1> to vector<1x256xi1>
    %53 = vector.broadcast %52 : vector<1x256xi1> to vector<4x256xi1>
    %54 = arith.select %53, %51, %50 : vector<4x256xi1>, vector<4x256xbf16>
    %cst_14 = arith.constant 0.000000e+00 : bf16
    %55 = vector.broadcast %cst_14 : bf16 to vector<4x15xbf16>
    %56 = vector.extract_strided_slice %2 {offsets = [0, 15], sizes = [4, 241], strides = [1, 1]} : vector<4x256xbf16> to vector<4x241xbf16>
    %57 = tpu.concatenate %56, %55 in 1 : vector<4x241xbf16>, vector<4x15xbf16> -> vector<4x256xbf16>
    %cst_15 = arith.constant 0.000000e+00 : bf16
    %58 = vector.broadcast %cst_15 : bf16 to vector<4x256xbf16>
    %59 = vector.shape_cast %21 : vector<1x256xi1> to vector<1x256xi1>
    %60 = vector.broadcast %59 : vector<1x256xi1> to vector<4x256xi1>
    %61 = arith.select %60, %58, %57 : vector<4x256xi1>, vector<4x256xbf16>
    %cst_16 = arith.constant 0.000000e+00 : bf16
    %62 = vector.broadcast %cst_16 : bf16 to vector<4x16xbf16>
    %63 = vector.extract_strided_slice %2 {offsets = [0, 16], sizes = [4, 240], strides = [1, 1]} : vector<4x256xbf16> to vector<4x240xbf16>
    %64 = tpu.concatenate %63, %62 in 1 : vector<4x240xbf16>, vector<4x16xbf16> -> vector<4x256xbf16>
    %cst_17 = arith.constant 0.000000e+00 : bf16
    %65 = vector.broadcast %cst_17 : bf16 to vector<4x17xbf16>
    %66 = vector.extract_strided_slice %2 {offsets = [0, 17], sizes = [4, 239], strides = [1, 1]} : vector<4x256xbf16> to vector<4x239xbf16>
    %67 = tpu.concatenate %66, %65 in 1 : vector<4x239xbf16>, vector<4x17xbf16> -> vector<4x256xbf16>
    %cst_18 = arith.constant 0.000000e+00 : bf16
    %68 = vector.broadcast %cst_18 : bf16 to vector<4x256xbf16>
    %69 = vector.shape_cast %23 : vector<1x256xi1> to vector<1x256xi1>
    %70 = vector.broadcast %69 : vector<1x256xi1> to vector<4x256xi1>
    %71 = arith.select %70, %68, %67 : vector<4x256xi1>, vector<4x256xbf16>
    %72 = tpu.concatenate %30, %33, %40, %47, %2, %54, %61, %64, %71 in 0 : vector<4x256xbf16>, vector<4x256xbf16>, vector<4x256xbf16>, vector<4x256xbf16>, vector<4x256xbf16>, vector<4x256xbf16>, vector<4x256xbf16>, vector<4x256xbf16>, vector<4x256xbf16> -> vector<36x256xbf16>
    %c0_19 = arith.constant 0 : index
    %c0_20 = arith.constant 0 : index
    %73 = vector.load %arg2[%c0_19, %c0_20] : memref<8x36xbf16, #tpu.memory_space<vmem>>, vector<8x36xbf16>
    %cst_21 = arith.constant dense<0.000000e+00> : vector<8x256xf32>
    %74 = tpu.matmul %73, %72, %cst_21 {dimension_numbers = #tpu.dot_dimension_numbers<[1], [0], [0], [1], [0, 0, 1, 1], [], []>} : vector<8x36xbf16>, vector<36x256xbf16>, vector<8x256xf32> -> vector<8x256xf32>
    %75 = arith.truncf %74 : vector<8x256xf32> to vector<8x256xbf16>
    %c0_22 = arith.constant 0 : index
    %c0_23 = arith.constant 0 : index
    %c0_24 = arith.constant 0 : index
    %76 = vector.load %arg3[%c0_22, %c0_23, %c0_24] : memref<1x8x256xbf16, #tpu.memory_space<vmem>>, vector<1x8x256xbf16>
    %77 = vector.shape_cast %76 : vector<1x8x256xbf16> to vector<8x256xbf16>
    %78 = vector.shape_cast %75 : vector<8x256xbf16> to vector<1x8x256xbf16>
    tpu.vector_store %arg3[%c0_22, %c0_23, %c0_24], %78 {strides = array<i32>} : memref<1x8x256xbf16, #tpu.memory_space<vmem>>, vector<1x8x256xbf16>,
    %cst_25 = arith.constant dense<0.000000e+00> : vector<8xf32>
    %79 = vector.multi_reduction <add>, %74, %cst_25 [1] : vector<8x256xf32> to vector<8xf32>
    %80 = vector.shape_cast %79 : vector<8xf32> to vector<8x1xf32>
    %81 = arith.mulf %74, %74 : vector<8x256xf32>
    %cst_26 = arith.constant dense<0.000000e+00> : vector<8xf32>
    %82 = vector.multi_reduction <add>, %81, %cst_26 [1] : vector<8x256xf32> to vector<8xf32>
    %83 = vector.shape_cast %82 : vector<8xf32> to vector<8x1xf32>
    %84 = tpu.concatenate %80, %83 in 1 : vector<8x1xf32>, vector<8x1xf32> -> vector<8x2xf32>
    %c0_27 = arith.constant 0 : index
    %c0_28 = arith.constant 0 : index
    %c0_29 = arith.constant 0 : index
    %85 = vector.load %arg4[%c0_27, %c0_28, %c0_29] : memref<1x8x2xf32, #tpu.memory_space<vmem>>, vector<1x8x2xf32>
    %86 = vector.shape_cast %85 : vector<1x8x2xf32> to vector<8x2xf32>
    %87 = vector.shape_cast %84 : vector<8x2xf32> to vector<1x8x2xf32>
    tpu.vector_store %arg4[%c0_27, %c0_28, %c0_29], %87 {strides = array<i32>} : memref<1x8x2xf32, #tpu.memory_space<vmem>>, vector<1x8x2xf32>,
    return
  }
  func.func @transform_0(%arg0: i32) -> (i32, i32, i32) {
    %c0_i32 = arith.constant 0 : i32
    %c0_i32_0 = arith.constant 0 : i32
    %c0_i32_1 = arith.constant 0 : i32
    return %arg0, %c0_i32, %c0_i32_0 : i32, i32, i32
  }
  func.func @transform_1(%arg0: i32) -> (i32, i32) {
    %c0_i32 = arith.constant 0 : i32
    %c0_i32_0 = arith.constant 0 : i32
    %c0_i32_1 = arith.constant 0 : i32
    return %c0_i32, %c0_i32_0 : i32, i32
  }
  func.func @transform_2(%arg0: i32) -> (i32, i32, i32) {
    %c0_i32 = arith.constant 0 : i32
    %c0_i32_0 = arith.constant 0 : i32
    %c0_i32_1 = arith.constant 0 : i32
    return %arg0, %c0_i32, %c0_i32_0 : i32, i32, i32
  }
  func.func @transform_3(%arg0: i32) -> (i32, i32, i32) {
    %c0_i32 = arith.constant 0 : i32
    %c0_i32_0 = arith.constant 0 : i32
    %c0_i32_1 = arith.constant 0 : i32
    return %arg0, %c0_i32, %c0_i32_0 : i32, i32, i32
  }
}

</mosaic_0001>

<llo_original>
// kernel: vgg_layer_forward.3
$region0: #{vgg_layer_forward.3}
  #allocation0 [shape = 'u32[]', space=smem, size = 0x4, offset = 0x4, fixed_abs, tag = 'smem constant byte address 0x4 - core index']
  #allocation1 [shape = 'u32[144,128]{1,0:T(1,128)}', space=vmem, size = 0x12000, scoped, tag = 'internal scratch']
  %s0 = inlined_call_operand.vmem [shape: bf16[2,8,256], index: 0, kind: input, shape index: {}]
  %s1 = inlined_call_operand.vmem [shape: f32[1,8,1], index: 1, kind: input, shape index: {}]
  %s2 = inlined_call_operand.vmem [shape: f32[1,8,1], index: 2, kind: input, shape index: {}]
  %s3 = inlined_call_operand.vmem [shape: f32[2,8,256], index: 3, kind: output, shape index: {}]
  %s4 = sld [smem:[#allocation0]]
  $region45: #{vgg_layer_forward.3} parent=0
    _
  %s6 = ssub.s32 1, %s4
  %s7 = scalar_select 0, %s6, %s4
  loop: start=0, step=1, limit=4
  $region2: #{vgg_layer_forward.3} parent=0 // loop_pre_header
    _
  $region3: #{vgg_layer_forward.3} parent=0 // loop_header
    %s9 = sphi 0, %s13
    %p10 = scmp.ge.s32.totalorder %s9, 4
    %s16 = sphi 0, %s28
    %s17 = sphi 0, %s24
    %s18 = sphi 0, %s16
    %s19 = sphi 0, %s17
    %s20 = sphi 0, %s18
    %s21 = sphi 0, %s19
    %s33 = sphi 0, %s35
    %s36 = sphi 0, %s33
    %s37 = sphi 0, %s36
    %s53 = sphi 0, %s37
    %s57 = sphi 0, %s57
    %s59 = sphi 0, %s57
    %s60 = sphi 0, %s59
    %s74 = sphi 0, %s60
    %s78 = sphi 0, %s78
    %s80 = sphi 0, %s78
    %s81 = sphi 0, %s80
    %s95 = sphi 0, %s81
    %s103 = sphi 0, %s105
    %s106 = sphi 0, %s103
    %s107 = sphi 0, %s106
    %s123 = sphi 0, %s107
  $region4: #{vgg_layer_forward.3} parent=0 // loop_header_branch
    %12 = sbr.rel (%p10) target = $region8
  $region5: #{vgg_layer_forward.3} parent=0 // loop_body
    %s14 = ssub.s32 %s9, 1
    %s15 = ssub.s32 %s9, 2
    %s22 = sadd.s32 1, %s17
    %p23 = scmp.ge.s32.totalorder %s22, 1
    %s24 = scalar_select %p23, 0, %s22
    %s25 = sadd.s32 1, %s16
    %s26 = scalar_select %p23, %s25, %s16
    %p27 = scmp.ge.s32.totalorder %s26, 2
    %s28 = scalar_select %p27, 0, %s26
    %s29 = ssub.s32 %s16, %s28
    %s30 = ssub.s32 %s17, %s24
    %s31 = sor.u32 %s29, %s30
    %p32 = scmp.eq.s32.totalorder %s31, 0
    %s34 = sadd.s32 %s33, 1
    %s35 = scalar_select %p32, %s33, %s34
    %p38 = pneg %p32
    %p39 = scmp.eq.s32.totalorder %s9, 1
    %p40 = por %p38, %p39
    %p41 = scmp.ne.s32.totalorder %s33, %s36
    %p42 = scmp.eq.s32.totalorder %s9, 0
    %p43 = por %p41, %p42
    %p44 = scmp.ne.s32.totalorder %s33, %s36
    %p45 = scmp.eq.s32.totalorder %s14, 1
    %p46 = por %p44, %p45
    %p47 = scmp.ne.s32.totalorder %s36, %s37
    %p48 = scmp.eq.s32.totalorder %s14, 0
    %p49 = por %p47, %p48
    %p50 = scmp.ne.s32.totalorder %s36, %s37
    %p51 = scmp.eq.s32.totalorder %s15, 1
    %p52 = por %p50, %p51
    %p54 = scmp.ne.s32.totalorder %s37, %s53
    %p55 = scmp.eq.s32.totalorder %s15, 0
    %p56 = por %p54, %p55
    %s58 = sadd.s32 %s57, 1
    %p61 = scmp.eq.s32.totalorder %s9, 1
    %p62 = scmp.ne.s32.totalorder %s57, %s59
    %p63 = scmp.eq.s32.totalorder %s9, 0
    %p64 = por %p62, %p63
    %p65 = scmp.ne.s32.totalorder %s57, %s59
    %p66 = scmp.eq.s32.totalorder %s14, 1
    %p67 = por %p65, %p66
    %p68 = scmp.ne.s32.totalorder %s59, %s60
    %p69 = scmp.eq.s32.totalorder %s14, 0
    %p70 = por %p68, %p69
    %p71 = scmp.ne.s32.totalorder %s59, %s60
    %p72 = scmp.eq.s32.totalorder %s15, 1
    %p73 = por %p71, %p72
    %p75 = scmp.ne.s32.totalorder %s60, %s74
    %p76 = scmp.eq.s32.totalorder %s15, 0
    %p77 = por %p75, %p76
    %s79 = sadd.s32 %s78, 1
    %p82 = scmp.eq.s32.totalorder %s9, 1
    %p83 = scmp.ne.s32.totalorder %s78, %s80
    %p84 = scmp.eq.s32.totalorder %s9, 0
    %p85 = por %p83, %p84
    %p86 = scmp.ne.s32.totalorder %s78, %s80
    %p87 = scmp.eq.s32.totalorder %s14, 1
    %p88 = por %p86, %p87
    %p89 = scmp.ne.s32.totalorder %s80, %s81
    %p90 = scmp.eq.s32.totalorder %s14, 0
    %p91 = por %p89, %p90
    %p92 = scmp.ne.s32.totalorder %s80, %s81
    %p93 = scmp.eq.s32.totalorder %s15, 1
    %p94 = por %p92, %p93
    %p96 = scmp.ne.s32.totalorder %s81, %s95
    %p97 = scmp.eq.s32.totalorder %s15, 0
    %p98 = por %p96, %p97
    %s99 = ssub.s32 %s16, %s28
    %s100 = ssub.s32 %s17, %s24
    %s101 = sor.u32 %s99, %s100
    %p102 = scmp.eq.s32.totalorder %s101, 0
    %s104 = sadd.s32 %s103, 1
    %s105 = scalar_select %p102, %s103, %s104
    %p108 = pneg %p102
    %p109 = scmp.eq.s32.totalorder %s9, 1
    %p110 = por %p108, %p109
    %p111 = scmp.ne.s32.totalorder %s103, %s106
    %p112 = scmp.eq.s32.totalorder %s9, 0
    %p113 = por %p111, %p112
    %p114 = scmp.ne.s32.totalorder %s103, %s106
    %p115 = scmp.eq.s32.totalorder %s14, 1
    %p116 = por %p114, %p115
    %p117 = scmp.ne.s32.totalorder %s106, %s107
    %p118 = scmp.eq.s32.totalorder %s14, 0
    %p119 = por %p117, %p118
    %p120 = scmp.ne.s32.totalorder %s106, %s107
    %p121 = scmp.eq.s32.totalorder %s15, 1
    %p122 = por %p120, %p121
    %p124 = scmp.ne.s32.totalorder %s107, %s123
    %p125 = scmp.eq.s32.totalorder %s15, 0
    %p126 = por %p124, %p125
    %p127 = scmp.le.s32.totalorder 1, %s9
    %p128 = scmp.lt.s32.totalorder %s9, 3
    %p129 = pnand %p127, %p128
    %p130 = pneg %p129
    // Predicated region
    $region9: #{vgg_layer_forward.3} parent=5 // pred_check
      _
    $region10: #{vgg_layer_forward.3} parent=5 // pred_check_branch
      %132 = sbr.rel (%p129) target = $region12
    $region11: #{vgg_layer_forward.3} parent=5 // pred_region
      %s133 = ssub.s32 %s9, 1
      // Predicated region
      $region13: #{vgg_layer_forward.3} parent=11 // pred_check
        %p134 = pneg %p70
      $region14: #{vgg_layer_forward.3} parent=11 // pred_check_branch
        %136 = sbr.rel (%p134) target = $region16
      $region15: #{vgg_layer_forward.3} parent=11 // pred_region
        _
      $region16: #{vgg_layer_forward.3} parent=11 // pred_fallthru
        _
      // Predicated region
      $region17: #{vgg_layer_forward.3} parent=11 // pred_check
        %p137 = pneg %p91
      $region18: #{vgg_layer_forward.3} parent=11 // pred_check_branch
        %139 = sbr.rel (%p137) target = $region20
      $region19: #{vgg_layer_forward.3} parent=11 // pred_region
        _
      $region20: #{vgg_layer_forward.3} parent=11 // pred_fallthru
        _
    $region12: #{vgg_layer_forward.3} parent=5 // pred_fallthru
      _
    %p140 = scmp.lt.s32.totalorder %s9, 2
    // Predicated region
    $region21: #{vgg_layer_forward.3} parent=5 // pred_check
      %p141 = pneg %p140
    $region22: #{vgg_layer_forward.3} parent=5 // pred_check_branch
      %143 = sbr.rel (%p141) target = $region24
    $region23: #{vgg_layer_forward.3} parent=5 // pred_region
      // Predicated region
      $region25: #{vgg_layer_forward.3} parent=23 // pred_check
        %p144 = pneg %p43
      $region26: #{vgg_layer_forward.3} parent=23 // pred_check_branch
        %146 = sbr.rel (%p144) target = $region28
      $region27: #{vgg_layer_forward.3} parent=23 // pred_region
        %s147 = smul.u32 2, %s17
        %p148 = scmp.lt.s32.totalorder %s16, 1
        %s149 = scalar_select %p148, %s16, 1
        %p150 = scmp.lt.s32.totalorder %s147, 1
        %s151 = scalar_select %p150, %s147, 1
        %s152 = smul.addr %s149, 2
        %s153 = sadd.s32 %s151, %s152
        %s154 = smul.addr %s153, 4
        %s155 = scalar_lea.vmem %s0, %s154
        %s156 = smul.u32 2, %s17
      $region28: #{vgg_layer_forward.3} parent=23 // pred_fallthru
        _
    $region24: #{vgg_layer_forward.3} parent=5 // pred_fallthru
      _
    %p157 = scmp.le.s32.totalorder 1, %s9
    %p158 = scmp.lt.s32.totalorder %s9, 3
    %p159 = pnand %p157, %p158
    %p160 = pneg %p159
    // Predicated region
    $region29: #{vgg_layer_forward.3} parent=5 // pred_check
      _
    $region30: #{vgg_layer_forward.3} parent=5 // pred_check_branch
      %162 = sbr.rel (%p159) target = $region32
    $region31: #{vgg_layer_forward.3} parent=5 // pred_region
      %s163 = ssub.s32 %s9, 1
      %s164 = smul.u32 2, %s19
      %p165 = scmp.lt.s32.totalorder %s18, 1
      %s166 = scalar_select %p165, %s18, 1
      %p167 = scmp.lt.s32.totalorder %s164, 1
      %s168 = scalar_select %p167, %s164, 1
      %s169 = smul.addr %s166, 2
      %s170 = sadd.s32 %s168, %s169
      %s171 = smul.addr %s170, 4
      %s172 = scalar_lea.vmem %s0, %s171
      %p173 = pneg %p49
      %p174 = pneg %p46
      %p175 = pneg %p70
      %p176 = pneg %p67
      %p177 = pneg %p91
      %p178 = pneg %p88
      %p179 = pneg %p119
      %p180 = pneg %p116
      %s181 = smul.u32 2, %s19
      %p182 = scmp.lt.s32.totalorder %s18, 1
      %s183 = scalar_select %p182, %s18, 1
      %p184 = scmp.lt.s32.totalorder %s181, 1
      %s185 = scalar_select %p184, %s181, 1
      %s186 = smul.addr %s183, 2
      %s187 = sadd.s32 %s185, %s186
      %s188 = smul.addr %s187, 8
      %s189 = scalar_lea.vmem %s3, %s188
      %s190 = smul.u32 2, %s19
      %p191 = scmp.lt.s32.totalorder %s18, 1
      %s192 = scalar_select %p191, %s18, 1
      %p193 = scmp.lt.s32.totalorder %s190, 1
      %s194 = scalar_select %p193, %s190, 1
      %s195 = smul.addr %s192, 2
      %s196 = sadd.s32 %s194, %s195
      %s197 = smul.addr %s196, 4
      %s198 = scalar_lea.vmem %s0, %s197
      %s199 = smul.u32 2, %s19
      %s200 = smul.u32 2, %s19
      %p201 = scmp.lt.s32.totalorder %s18, 1
      %s202 = scalar_select %p201, %s18, 1
      %p203 = scmp.lt.s32.totalorder %s200, 1
      %s204 = scalar_select %p203, %s200, 1
      %s205 = smul.addr %s202, 2
      %s206 = sadd.s32 %s204, %s205
      %s207 = smul.addr %s206, 8
      %s208 = scalar_lea.vmem %s3, %s207
      %s209 = smul.u32 2, %s19
      %v210 = vld [vmem:[%s198] sm:$0xff]
      %v211 = vunpack.c.l.bf16 %v210
      %v212 = vunpack.c.h.bf16 %v210
      %v213 = vld [vmem:[%s1] sm:$0xff]
      %215 = vset.pattern.permute.xlu0 0
      %216 = vperm.xlu0 %215, %v213
      %v217 = vpop.permute.xlu0 %216
      %v219 = vmul.f32 %v211, %v217
      %v220 = vmul.f32 %v212, %v217
      %v221 = vld [vmem:[%s2] sm:$0xff]
      %223 = vset.pattern.permute.xlu0 0
      %224 = vperm.xlu0 %223, %v221
      %v225 = vpop.permute.xlu0 %224
      %v227 = vadd.f32 %v219, %v225
      %v228 = vadd.f32 %v220, %v225
      %v229 = vmul.f32 %v227, 0.2
      %v230 = vmul.f32 %v228, 0.2
      %v231 = vmax.f32 %v227, %v229
      %v232 = vmax.f32 %v228, %v230
      %233 = vst [vmem:[%s208] sm:$0xff] %v231
      %234 = vst [vmem:[%s208 + $0x8] sm:$0xff] %v232
      %s235 = smul.u32 2, %s19
      %p236 = scmp.lt.s32.totalorder %s18, 1
      %s237 = scalar_select %p236, %s18, 1
      %p238 = scmp.lt.s32.totalorder %s235, 1
      %s239 = scalar_select %p238, %s235, 1
      %s240 = smul.addr %s237, 2
      %s241 = sadd.s32 %s239, %s240
      %s242 = smul.addr %s241, 8
      %s243 = scalar_lea.vmem %s3, %s242
      // Predicated region
      $region33: #{vgg_layer_forward.3} parent=31 // pred_check
        %p244 = pneg %p116
      $region34: #{vgg_layer_forward.3} parent=31 // pred_check_branch
        %246 = sbr.rel (%p244) target = $region36
      $region35: #{vgg_layer_forward.3} parent=31 // pred_region
        %s247 = smul.u32 2, %s19
      $region36: #{vgg_layer_forward.3} parent=31 // pred_fallthru
        _
    $region32: #{vgg_layer_forward.3} parent=5 // pred_fallthru
      _
    %p248 = scmp.le.s32.totalorder 2, %s9
    // Predicated region
    $region37: #{vgg_layer_forward.3} parent=5 // pred_check
      %p249 = pneg %p248
    $region38: #{vgg_layer_forward.3} parent=5 // pred_check_branch
      %251 = sbr.rel (%p249) target = $region40
    $region39: #{vgg_layer_forward.3} parent=5 // pred_region
      %s252 = ssub.s32 %s9, 2
      // Predicated region
      $region41: #{vgg_layer_forward.3} parent=39 // pred_check
        %p253 = pneg %p122
      $region42: #{vgg_layer_forward.3} parent=39 // pred_check_branch
        %255 = sbr.rel (%p253) target = $region44
      $region43: #{vgg_layer_forward.3} parent=39 // pred_region
        %s256 = smul.u32 2, %s21
        %p257 = scmp.lt.s32.totalorder %s20, 1
        %s258 = scalar_select %p257, %s20, 1
        %p259 = scmp.lt.s32.totalorder %s256, 1
        %s260 = scalar_select %p259, %s256, 1
        %s261 = smul.addr %s258, 2
        %s262 = sadd.s32 %s260, %s261
        %s263 = smul.addr %s262, 8
        %s264 = scalar_lea.vmem %s3, %s263
      $region44: #{vgg_layer_forward.3} parent=39 // pred_fallthru
        _
    $region40: #{vgg_layer_forward.3} parent=5 // pred_fallthru
      _
  $region6: #{vgg_layer_forward.3} parent=0 // loop_footer
    %s13 = sadd.s32 1, %s9
  $region7: #{vgg_layer_forward.3} parent=0 // loop_footer_branch
    %8 = sbr.rel target = $region3
  $region8: #{vgg_layer_forward.3} parent=0 // loop_exit
    _

// kernel: vgg_layer_forward.2
$region0: #{vgg_layer_forward.2}
  #allocation0 [shape = 'u32[]', space=smem, size = 0x4, offset = 0x4, fixed_abs, tag = 'smem constant byte address 0x4 - core index']
  #allocation1 [shape = 'u32[144,128]{1,0:T(1,128)}', space=vmem, size = 0x12000, scoped, tag = 'internal scratch']
  %s0 = inlined_call_operand.vmem [shape: f32[2,4,256], index: 0, kind: input, shape index: {}]
  %s1 = inlined_call_operand.vmem [shape: bf16[8,36], index: 1, kind: input, shape index: {}]
  %s2 = inlined_call_operand.vmem [shape: bf16[2,8,256], index: 2, kind: output, shape index: {0}]
  %s3 = inlined_call_operand.vmem [shape: f32[2,8,2], index: 3, kind: output, shape index: {1}]
  %4 = xla_tuple %s2, %s3
  %s5 = sld [smem:[#allocation0]]
  $region49: #{vgg_layer_forward.2} parent=0
    _
  %s7 = ssub.s32 1, %s5
  %s8 = scalar_select 0, %s7, %s5
  loop: start=0, step=1, limit=4
  $region2: #{vgg_layer_forward.2} parent=0 // loop_pre_header
    _
  $region3: #{vgg_layer_forward.2} parent=0 // loop_header
    %s10 = sphi 0, %s14
    %p11 = scmp.ge.s32.totalorder %s10, 4
    %s20 = sphi 0, %s22
    %s23 = sphi 0, %s20
    %s24 = sphi 0, %s23
    %s40 = sphi 0, %s24
    %s44 = sphi 0, %s44
    %s46 = sphi 0, %s44
    %s47 = sphi 0, %s46
    %s61 = sphi 0, %s47
    %s67 = sphi 0, %s69
    %s70 = sphi 0, %s67
    %s71 = sphi 0, %s70
    %s87 = sphi 0, %s71
    %s93 = sphi 0, %s95
    %s96 = sphi 0, %s93
    %s97 = sphi 0, %s96
    %s113 = sphi 0, %s97
  $region4: #{vgg_layer_forward.2} parent=0 // loop_header_branch
    %13 = sbr.rel (%p11) target = $region8
  $region5: #{vgg_layer_forward.2} parent=0 // loop_body
    %s15 = ssub.s32 %s10, 1
    %s16 = ssub.s32 %s10, 2
    %s17 = sadd.s32 %s10, 1
    %s18 = ssub.s32 %s10, %s17
    %p19 = scmp.eq.s32.totalorder %s18, 0
    %s21 = sadd.s32 %s20, 1
    %s22 = scalar_select %p19, %s20, %s21
    %p25 = pneg %p19
    %p26 = scmp.eq.s32.totalorder %s10, 1
    %p27 = por %p25, %p26
    %p28 = scmp.ne.s32.totalorder %s20, %s23
    %p29 = scmp.eq.s32.totalorder %s10, 0
    %p30 = por %p28, %p29
    %p31 = scmp.ne.s32.totalorder %s20, %s23
    %p32 = scmp.eq.s32.totalorder %s15, 1
    %p33 = por %p31, %p32
    %p34 = scmp.ne.s32.totalorder %s23, %s24
    %p35 = scmp.eq.s32.totalorder %s15, 0
    %p36 = por %p34, %p35
    %p37 = scmp.ne.s32.totalorder %s23, %s24
    %p38 = scmp.eq.s32.totalorder %s16, 1
    %p39 = por %p37, %p38
    %p41 = scmp.ne.s32.totalorder %s24, %s40
    %p42 = scmp.eq.s32.totalorder %s16, 0
    %p43 = por %p41, %p42
    %s45 = sadd.s32 %s44, 1
    %p48 = scmp.eq.s32.totalorder %s10, 1
    %p49 = scmp.ne.s32.totalorder %s44, %s46
    %p50 = scmp.eq.s32.totalorder %s10, 0
    %p51 = por %p49, %p50
    %p52 = scmp.ne.s32.totalorder %s44, %s46
    %p53 = scmp.eq.s32.totalorder %s15, 1
    %p54 = por %p52, %p53
    %p55 = scmp.ne.s32.totalorder %s46, %s47
    %p56 = scmp.eq.s32.totalorder %s15, 0
    %p57 = por %p55, %p56
    %p58 = scmp.ne.s32.totalorder %s46, %s47
    %p59 = scmp.eq.s32.totalorder %s16, 1
    %p60 = por %p58, %p59
    %p62 = scmp.ne.s32.totalorder %s47, %s61
    %p63 = scmp.eq.s32.totalorder %s16, 0
    %p64 = por %p62, %p63
    %s65 = ssub.s32 %s10, %s17
    %p66 = scmp.eq.s32.totalorder %s65, 0
    %s68 = sadd.s32 %s67, 1
    %s69 = scalar_select %p66, %s67, %s68
    %p72 = pneg %p66
    %p73 = scmp.eq.s32.totalorder %s10, 1
    %p74 = por %p72, %p73
    %p75 = scmp.ne.s32.totalorder %s67, %s70
    %p76 = scmp.eq.s32.totalorder %s10, 0
    %p77 = por %p75, %p76
    %p78 = scmp.ne.s32.totalorder %s67, %s70
    %p79 = scmp.eq.s32.totalorder %s15, 1
    %p80 = por %p78, %p79
    %p81 = scmp.ne.s32.totalorder %s70, %s71
    %p82 = scmp.eq.s32.totalorder %s15, 0
    %p83 = por %p81, %p82
    %p84 = scmp.ne.s32.totalorder %s70, %s71
    %p85 = scmp.eq.s32.totalorder %s16, 1
    %p86 = por %p84, %p85
    %p88 = scmp.ne.s32.totalorder %s71, %s87
    %p89 = scmp.eq.s32.totalorder %s16, 0
    %p90 = por %p88, %p89
    %s91 = ssub.s32 %s10, %s17
    %p92 = scmp.eq.s32.totalorder %s91, 0
    %s94 = sadd.s32 %s93, 1
    %s95 = scalar_select %p92, %s93, %s94
    %p98 = pneg %p92
    %p99 = scmp.eq.s32.totalorder %s10, 1
    %p100 = por %p98, %p99
    %p101 = scmp.ne.s32.totalorder %s93, %s96
    %p102 = scmp.eq.s32.totalorder %s10, 0
    %p103 = por %p101, %p102
    %p104 = scmp.ne.s32.totalorder %s93, %s96
    %p105 = scmp.eq.s32.totalorder %s15, 1
    %p106 = por %p104, %p105
    %p107 = scmp.ne.s32.totalorder %s96, %s97
    %p108 = scmp.eq.s32.totalorder %s15, 0
    %p109 = por %p107, %p108
    %p110 = scmp.ne.s32.totalorder %s96, %s97
    %p111 = scmp.eq.s32.totalorder %s16, 1
    %p112 = por %p110, %p111
    %p114 = scmp.ne.s32.totalorder %s97, %s113
    %p115 = scmp.eq.s32.totalorder %s16, 0
    %p116 = por %p114, %p115
    %p117 = scmp.le.s32.totalorder 1, %s10
    %p118 = scmp.lt.s32.totalorder %s10, 3
    %p119 = pnand %p117, %p118
    %p120 = pneg %p119
    // Predicated region
    $region9: #{vgg_layer_forward.2} parent=5 // pred_check
      _
    $region10: #{vgg_layer_forward.2} parent=5 // pred_check_branch
      %122 = sbr.rel (%p119) target = $region12
    $region11: #{vgg_layer_forward.2} parent=5 // pred_region
      %s123 = ssub.s32 %s10, 1
      // Predicated region
      $region13: #{vgg_layer_forward.2} parent=11 // pred_check
        %p124 = pneg %p57
      $region14: #{vgg_layer_forward.2} parent=11 // pred_check_branch
        %126 = sbr.rel (%p124) target = $region16
      $region15: #{vgg_layer_forward.2} parent=11 // pred_region
        _
      $region16: #{vgg_layer_forward.2} parent=11 // pred_fallthru
        _
    $region12: #{vgg_layer_forward.2} parent=5 // pred_fallthru
      _
    %p127 = scmp.lt.s32.totalorder %s10, 2
    // Predicated region
    $region17: #{vgg_layer_forward.2} parent=5 // pred_check
      %p128 = pneg %p127
    $region18: #{vgg_layer_forward.2} parent=5 // pred_check_branch
      %130 = sbr.rel (%p128) target = $region20
    $region19: #{vgg_layer_forward.2} parent=5 // pred_region
      // Predicated region
      $region21: #{vgg_layer_forward.2} parent=19 // pred_check
        %p131 = pneg %p30
      $region22: #{vgg_layer_forward.2} parent=19 // pred_check_branch
        %133 = sbr.rel (%p131) target = $region24
      $region23: #{vgg_layer_forward.2} parent=19 // pred_region
        %p134 = scmp.lt.s32.totalorder %s10, 1
        %s135 = scalar_select %p134, %s10, 1
        %s136 = smul.addr %s135, 2
        %s137 = smul.addr %s136, 4
        %s138 = scalar_lea.vmem %s0, %s137
      $region24: #{vgg_layer_forward.2} parent=19 // pred_fallthru
        _
    $region20: #{vgg_layer_forward.2} parent=5 // pred_fallthru
      _
    %p139 = scmp.le.s32.totalorder 1, %s10
    %p140 = scmp.lt.s32.totalorder %s10, 3
    %p141 = pnand %p139, %p140
    %p142 = pneg %p141
    // Predicated region
    $region25: #{vgg_layer_forward.2} parent=5 // pred_check
      _
    $region26: #{vgg_layer_forward.2} parent=5 // pred_check_branch
      %144 = sbr.rel (%p141) target = $region28
    $region27: #{vgg_layer_forward.2} parent=5 // pred_region
      %s145 = ssub.s32 %s10, 1
      %p146 = scmp.lt.s32.totalorder %s15, 1
      %s147 = scalar_select %p146, %s15, 1
      %s148 = smul.addr %s147, 2
      %s149 = smul.addr %s148, 4
      %s150 = scalar_lea.vmem %s0, %s149
      %p151 = pneg %p36
      %p152 = pneg %p33
      %p153 = pneg %p57
      %p154 = pneg %p54
      %p155 = pneg %p83
      %p156 = pneg %p80
      %p157 = scmp.lt.s32.totalorder %s15, 1
      %s158 = scalar_select %p157, %s15, 1
      %s159 = smul.addr %s158, 2
      %s160 = smul.addr %s159, 4
      %s161 = scalar_lea.vmem %s2, %s160
      %p162 = pneg %p109
      %p163 = pneg %p106
      %p164 = scmp.lt.s32.totalorder %s15, 1
      %s165 = scalar_select %p164, %s15, 1
      %s166 = smul.addr %s165, 8
      %s167 = scalar_lea.vmem %s3, %s166
      %p168 = scmp.lt.s32.totalorder %s15, 1
      %s169 = scalar_select %p168, %s15, 1
      %s170 = smul.addr %s169, 2
      %s171 = smul.addr %s170, 4
      %s172 = scalar_lea.vmem %s0, %s171
      %p173 = scmp.lt.s32.totalorder %s15, 1
      %s174 = scalar_select %p173, %s15, 1
      %s175 = smul.addr %s174, 2
      %s176 = smul.addr %s175, 4
      %s177 = scalar_lea.vmem %s2, %s176
      %p178 = scmp.lt.s32.totalorder %s15, 1
      %s179 = scalar_select %p178, %s15, 1
      %s180 = smul.addr %s179, 8
      %s181 = scalar_lea.vmem %s3, %s180
      %v185 = vld [vmem:[%s172] sm:$0xff]
      %v187 = vcombine.high %v185, %v185
      %v189 = vpack.c.bf16 %v185, %v185
      %v190 = vpack.c.bf16 %v187, %v187
      %v191 = vlaneseq
      %v192 = vand.u32 %v191, 127
      %v193 = vadd.s32 %v192, 128
      %vm194 = vcmp.lt.s32.totalorder %v192, 0
      %v195 = vsub.s32 0, %v192
      %v196 = vsel %vm194, %v195, %v192
      %v197 = vshrl.u32 %v196, 4
      %v198 = vand.u32 %v196, 15
      %v199 = vsub.s32 0, %v198
      %v200 = vsel %vm194, %v199, %v198
      %vm201 = vcmp.lt.s32.totalorder %v193, 0
      %v202 = vsub.s32 0, %v193
      %v203 = vsel %vm201, %v202, %v193
      %v204 = vshrl.u32 %v203, 4
      %v205 = vand.u32 %v203, 15
      %v206 = vsub.s32 0, %v205
      %v207 = vsel %vm201, %v206, %v205
      %vm208 = vcmp.ne.s32.totalorder %v200, 0
      %vm209 = vcmp.ne.s32.totalorder %v207, 0
      %vm210 = vcmp.lt.s32.totalorder %v200, 0
      %vm211 = vcmp.lt.s32.totalorder %v207, 0
      %vm212 = vmand %vm210, %vm208
      %vm213 = vmand %vm211, %vm209
      %v214 = vadd.s32 %v200, 16
      %v215 = vadd.s32 %v207, 16
      %v216 = vsel %vm212, %v214, %v200
      %v217 = vsel %vm213, %v215, %v207
      %vm218 = vcmp.eq.s32.totalorder %v216, 0
      %vm219 = vcmp.eq.s32.totalorder %v217, 0
      %vm220 = vcmp.eq.s32.totalorder %v216, 15
      %vm221 = vcmp.eq.s32.totalorder %v217, 15
      %224 = vrot.lane.b32.xlu0 %v189, 17
      %v225 = vpop.permute.xlu0 %224
      %226 = vrot.lane.b32.xlu0 %v190, 17
      %v227 = vpop.permute.xlu0 %226
      %vm228 = vcmask 138240
      %v229 = vsel %vm228, %v225, %v227
      %vm231 = vcmask 138240
      %v234 = vsel %vm231, 0, %v225
      %v236 = vsel %vm218, 1, 0
      %v237 = vsel %vm219, 1, 0
      %vm238 = vcmp.eq.s32.totalorder %v236, 1
      %vm239 = vcmp.eq.s32.totalorder %v237, 1
      %vm240 = vmpackc.low %vm239, %vm238
      %v241 = vsel %vm240, 65537, 0
      %v242 = vlaneseq
      %v243 = vshrl.u32 %v242, 7
      %v244 = vsub.s32 0, %v243
      %v245 = vrot.slane %v241, %v244
      %v246 = vlaneseq
      %v247 = vshrl.u32 %v246, 7
      %v248 = vsub.s32 4, %v247
      %v249 = vrot.slane %v241, %v248
      %vm250 = vcmp.ne.s16.totalorder %v245, 0
      %vm251 = vcmp.ne.s16.totalorder %v249, 0
      %v252 = vsel %vm250, 0, %v234
      %v253 = vsel %vm251, 0, %v229
      %254 = vrot.lane.b32.xlu0 %v189, 16
      %v255 = vpop.permute.xlu0 %254
      %256 = vrot.lane.b32.xlu0 %v190, 16
      %v257 = vpop.permute.xlu0 %256
      %vm258 = vcmask 130048
      %v259 = vsel %vm258, %v255, %v257
      %vm260 = vcmask 130048
      %v262 = vsel %vm260, 0, %v255
      %263 = vrot.lane.b32.xlu0 %v189, 15
      %v264 = vpop.permute.xlu0 %263
      %265 = vrot.lane.b32.xlu0 %v190, 15
      %v266 = vpop.permute.xlu0 %265
      %vm267 = vcmask 121856
      %v268 = vsel %vm267, %v264, %v266
      %vm270 = vcmask 121856
      %v272 = vsel %vm270, 0, %v264
      %v274 = vsel %vm220, 1, 0
      %v275 = vsel %vm221, 1, 0
      %vm276 = vcmp.eq.s32.totalorder %v274, 1
      %vm277 = vcmp.eq.s32.totalorder %v275, 1
      %vm278 = vmpackc.low %vm277, %vm276
      %v279 = vsel %vm278, 65537, 0
      %v280 = vlaneseq
      %v281 = vshrl.u32 %v280, 7
      %v282 = vsub.s32 0, %v281
      %v283 = vrot.slane %v279, %v282
      %v284 = vlaneseq
      %v285 = vshrl.u32 %v284, 7
      %v286 = vsub.s32 4, %v285
      %v287 = vrot.slane %v279, %v286
      %vm288 = vcmp.ne.s16.totalorder %v283, 0
      %vm289 = vcmp.ne.s16.totalorder %v287, 0
      %v290 = vsel %vm288, 0, %v272
      %v291 = vsel %vm289, 0, %v268
      %292 = vrot.lane.b32.xlu0 %v189, 1
      %v293 = vpop.permute.xlu0 %292
      %294 = vrot.lane.b32.xlu0 %v190, 1
      %v295 = vpop.permute.xlu0 %294
      %vm296 = vcmask 7168
      %v297 = vsel %vm296, %v293, %v295
      %vm299 = vcmask 7168
      %v301 = vsel %vm299, 0, %v293
      %v303 = vsel %vm250, 0, %v301
      %v304 = vsel %vm251, 0, %v297
      %305 = vrot.lane.b32.xlu0 %v189, 127
      %v306 = vpop.permute.xlu0 %305
      %307 = vrot.lane.b32.xlu0 %v190, 127
      %v308 = vpop.permute.xlu0 %307
      %vm309 = vcmask 1039360
      %v310 = vsel %vm309, %v306, %v308
      %vm312 = vcmask 1039360
      %v314 = vsel %vm312, %v308, 0
      %v316 = vsel %vm288, 0, %v310
      %v317 = vsel %vm289, 0, %v314
      %318 = vrot.lane.b32.xlu0 %v189, 113
      %v319 = vpop.permute.xlu0 %318
      %320 = vrot.lane.b32.xlu0 %v190, 113
      %v321 = vpop.permute.xlu0 %320
      %vm322 = vcmask 924672
      %v323 = vsel %vm322, %v319, %v321
      %vm325 = vcmask 924672
      %v327 = vsel %vm325, %v321, 0
      %v329 = vsel %vm250, 0, %v323
      %v330 = vsel %vm251, 0, %v327
      %331 = vrot.lane.b32.xlu0 %v189, 112
      %v332 = vpop.permute.xlu0 %331
      %333 = vrot.lane.b32.xlu0 %v190, 112
      %v334 = vpop.permute.xlu0 %333
      %vm335 = vcmask 916480
      %v336 = vsel %vm335, %v332, %v334
      %vm337 = vcmask 916480
      %v339 = vsel %vm337, %v334, 0
      %340 = vrot.lane.b32.xlu0 %v189, 111
      %v341 = vpop.permute.xlu0 %340
      %342 = vrot.lane.b32.xlu0 %v190, 111
      %v343 = vpop.permute.xlu0 %342
      %vm344 = vcmask 908288
      %v345 = vsel %vm344, %v341, %v343
      %vm347 = vcmask 908288
      %v349 = vsel %vm347, %v343, 0
      %v351 = vsel %vm288, 0, %v345
      %v352 = vsel %vm289, 0, %v349
      %v354 = vrot.slane %v262, 6
      %v355 = vrot.slane %v259, 6
      %v358 = vrot.slane %v290, 4
      %v359 = vrot.slane %v291, 4
      %v362 = vrot.slane %v303, 2
      %v363 = vrot.slane %v304, 2
      %v366 = vrot.slane %v316, 6
      %v367 = vrot.slane %v317, 6
      %v370 = vrot.slane %v329, 4
      %v371 = vrot.slane %v330, 4
      %v373 = vrot.slane %v336, 2
      %v374 = vrot.slane %v339, 2
      %vm375 = vcmask 1041408
      %v378 = vsel %vm375, %v252, %v354
      %v381 = vsel %vm375, %v253, %v355
      %vm382 = vcmask 1043456
      %v384 = vsel %vm382, %v378, %v358
      %v386 = vsel %vm382, %v381, %v359
      %vm387 = vcmask 1045504
      %v389 = vsel %vm387, %v384, %v362
      %v392 = vsel %vm387, %v386, %v363
      %v396 = vsel %vm375, %v189, %v366
      %v399 = vsel %vm375, %v190, %v367
      %v401 = vsel %vm382, %v396, %v370
      %v403 = vsel %vm382, %v399, %v371
      %v405 = vsel %vm387, %v401, %v373
      %v408 = vsel %vm387, %v403, %v374
      %v410 = vld [vmem:[%s1] sm:$0xf]
      %vm411 = vcmask 293888
      %v413 = vsel %vm411, %v410, 0
      %v416 = vsel %vm375, %v351, 0
      %v419 = vsel %vm375, %v352, 0
      %421 = vmatprep.subr.bf16.mxu0 %v392
      %422 = vmatpush1.bf16.msra.mxu0 %v389
      %423 = vmatprep.subr.bf16.mxu0 %v408
      %424 = vmatpush1.bf16.msra.mxu0 %v405
      %425 = vmatprep.subr.bf16.mxu0 %v419
      %426 = vmatpush1.bf16.msra.mxu0 %v416
      %427 = vmatprep.subr.bf16.mxu0 0
      %428 = vmatpush1.bf16.msra.mxu0 0
      %429 = vmatprep.subr.bf16.mxu0 0
      %430 = vmatpush1.bf16.msra.mxu0 0
      %431 = vmatprep.subr.bf16.mxu0 0
      %432 = vmatpush1.bf16.msra.mxu0 0
      %433 = vmatprep.subr.bf16.mxu0 0
      %434 = vmatpush1.bf16.msra.mxu0 0
      %435 = vmatprep.subr.bf16.mxu0 0
      %436 = vmatpush1.bf16.msra.mxu0 0
      %437 = vmatprep.subr.bf16.mxu0 0
      %438 = vmatpush1.bf16.msra.mxu0 0
      %439 = vmatprep.subr.bf16.mxu0 0
      %440 = vmatpush1.bf16.msra.mxu0 0
      %441 = vmatprep.subr.bf16.mxu0 0
      %442 = vmatpush1.bf16.msra.mxu0 0
      %443 = vmatprep.subr.bf16.mxu0 0
      %444 = vmatpush1.bf16.msra.mxu0 0
      %445 = vmatprep.subr.bf16.mxu0 0
      %446 = vmatpush1.bf16.msra.mxu0 0
      %447 = vmatprep.subr.bf16.mxu0 0
      %448 = vmatpush1.bf16.msra.mxu0 0
      %449 = vmatprep.subr.bf16.mxu0 0
      %450 = vmatpush1.bf16.msra.mxu0 0
      %451 = vmatprep.subr.bf16.mxu0 0
      %452 = vmatpush1.bf16.msra.mxu0 0
      %453 = vmatprep.mubr.bf16.mxu0 0
      %454 = vmatmul.mubr.bf16.gmra.mrb[0].mxu0 %v413
      %v455 = vpop.f32.mrb[0].mxu0
      %v456 = vadd.f32 0.0, %v455
      %v457 = vpop.f32.mrb[0].mxu0
      %v458 = vadd.f32 0.0, %v457
      %v459 = vpop.f32.mrb[0].mxu0
      %v460 = vpop.f32.mrb[0].mxu0
      %461 = vdwg.mxu0
      %v462 = vpack.c.bf16 %v456, %v456
      %v463 = vpack.c.bf16 %v458, %v458
      %v466 = vunpack.c.l.b16 %v462
      %v467 = vunpack.c.l.b16 %v463
      %v468 = vpack.c.b16 %v467, %v466
      %470 = vst [vmem:[%s177] sm:$0xff] %v468
      %v471 = vadd.f32 %v456, %v458
      %472 = vadd.xlane.f32.xlu0 %v471
      %v473 = vpop.xlane.xlu0 %472
      %v474 = vmul.f32 %v456, %v456
      %v475 = vmul.f32 %v458, %v458
      %v476 = vadd.f32 %v474, %v475
      %477 = vadd.xlane.f32.xlu0 %v476
      %v478 = vpop.xlane.xlu0 %477
      %v479 = vsel %vm299, %v473, %v478
      %vm480 = vcmask 15360
      %481 = vst.msk [vmem:[%s181] sm:$0xff] %vm480, %v479
      %p482 = scmp.lt.s32.totalorder %s15, 1
      %s483 = scalar_select %p482, %s15, 1
      %s484 = smul.addr %s483, 2
      %s485 = smul.addr %s484, 4
      %s486 = scalar_lea.vmem %s2, %s485
      %p487 = scmp.lt.s32.totalorder %s15, 1
      %s488 = scalar_select %p487, %s15, 1
      %s489 = smul.addr %s488, 8
      %s490 = scalar_lea.vmem %s3, %s489
      // Predicated region
      $region29: #{vgg_layer_forward.2} parent=27 // pred_check
        %p491 = pneg %p80
      $region30: #{vgg_layer_forward.2} parent=27 // pred_check_branch
        %493 = sbr.rel (%p491) target = $region32
      $region31: #{vgg_layer_forward.2} parent=27 // pred_region
        _
      $region32: #{vgg_layer_forward.2} parent=27 // pred_fallthru
        _
      // Predicated region
      $region33: #{vgg_layer_forward.2} parent=27 // pred_check
        %p494 = pneg %p106
      $region34: #{vgg_layer_forward.2} parent=27 // pred_check_branch
        %496 = sbr.rel (%p494) target = $region36
      $region35: #{vgg_layer_forward.2} parent=27 // pred_region
        _
      $region36: #{vgg_layer_forward.2} parent=27 // pred_fallthru
        _
    $region28: #{vgg_layer_forward.2} parent=5 // pred_fallthru
      _
    %p497 = scmp.le.s32.totalorder 2, %s10
    // Predicated region
    $region37: #{vgg_layer_forward.2} parent=5 // pred_check
      %p498 = pneg %p497
    $region38: #{vgg_layer_forward.2} parent=5 // pred_check_branch
      %500 = sbr.rel (%p498) target = $region40
    $region39: #{vgg_layer_forward.2} parent=5 // pred_region
      %s501 = ssub.s32 %s10, 2
      // Predicated region
      $region41: #{vgg_layer_forward.2} parent=39 // pred_check
        %p502 = pneg %p86
      $region42: #{vgg_layer_forward.2} parent=39 // pred_check_branch
        %504 = sbr.rel (%p502) target = $region44
      $region43: #{vgg_layer_forward.2} parent=39 // pred_region
        %p505 = scmp.lt.s32.totalorder %s16, 1
        %s506 = scalar_select %p505, %s16, 1
        %s507 = smul.addr %s506, 2
        %s508 = smul.addr %s507, 4
        %s509 = scalar_lea.vmem %s2, %s508
      $region44: #{vgg_layer_forward.2} parent=39 // pred_fallthru
        _
      // Predicated region
      $region45: #{vgg_layer_forward.2} parent=39 // pred_check
        %p510 = pneg %p112
      $region46: #{vgg_layer_forward.2} parent=39 // pred_check_branch
        %512 = sbr.rel (%p510) target = $region48
      $region47: #{vgg_layer_forward.2} parent=39 // pred_region
        %p513 = scmp.lt.s32.totalorder %s16, 1
        %s514 = scalar_select %p513, %s16, 1
        %s515 = smul.addr %s514, 8
        %s516 = scalar_lea.vmem %s3, %s515
      $region48: #{vgg_layer_forward.2} parent=39 // pred_fallthru
        _
    $region40: #{vgg_layer_forward.2} parent=5 // pred_fallthru
      _
  $region6: #{vgg_layer_forward.2} parent=0 // loop_footer
    %s14 = sadd.s32 1, %s10
  $region7: #{vgg_layer_forward.2} parent=0 // loop_footer_branch
    %9 = sbr.rel target = $region3
  $region8: #{vgg_layer_forward.2} parent=0 // loop_exit
    _

</llo_original>
